<compile_context>
chip_gen: v5e
topology: v5e:2x2
jax: 0.10.0
libtpu: 0.0.40
codegen_flags: <defaults>
</compile_context>

<pallas_src>
import jax
import jax.numpy as jnp
from jax.experimental import pallas as pl
from jax.experimental.pallas import tpu as pltpu


def _round_up(x, m):
    return ((x + m - 1) // m) * m


def mlp_kernel(x_ref, w1t_ref, b1_ref, w2t_ref, b2_ref, w3_ref, b3_ref, o_ref):
    # x_ref: [bm, n_in] — batch rows on sublanes, features on lanes.
    x = x_ref[...]

    # Layer 1: [bm, n_in] @ [n_in, 16] -> [bm, 16]  (row 15 is a zero pad)
    h1 = jnp.dot(
        x, w1t_ref[...],
        preferred_element_type=jnp.float32,
        precision=jax.lax.Precision.HIGHEST,
    ) + b1_ref[...]
    h1 = jnp.maximum(h1, 0.0)

    # Layer 2: [bm, 16] @ [16, 8] -> [bm, 8]
    h2 = jnp.dot(
        h1, w2t_ref[...],
        preferred_element_type=jnp.float32,
        precision=jax.lax.Precision.HIGHEST,
    ) + b2_ref[...]
    h2 = jnp.maximum(h2, 0.0)

    # Layer 3 (8 -> 1): VPU multiply + lane reduce instead of an N=1 MXU pass.
    # w3_ref: [1, 8], b3_ref: [1, 1]
    h3 = jnp.sum(h2 * w3_ref[...], axis=1, keepdims=True) + b3_ref[...]
    o_ref[...] = jnp.maximum(h3, 0.0).astype(o_ref.dtype)


def _prep_weights(params):
    """PyTorch-layout params -> kernel operands (tiny one-time transposes)."""
    w1, b1 = params["w1"], params["b1"]   # [15, n_in], [15]
    w2, b2 = params["w2"], params["b2"]   # [8, 15],    [8]
    w3, b3 = params["w3"], params["b3"]   # [1, 8],     [1]

    h1_pad = 16  # pad layer-1 outputs 15 -> 16 (and layer-2 K) for clean tiling
    w1p = jnp.pad(w1, ((0, h1_pad - w1.shape[0]), (0, 0)))   # [16, n_in]
    b1p = jnp.pad(b1, (0, h1_pad - b1.shape[0]))              # [16]
    w2p = jnp.pad(w2, ((0, 0), (0, h1_pad - w2.shape[1])))    # [8, 16]

    return (
        w1p.T,            # [n_in, 16]
        b1p[None, :],     # [1, 16]
        w2p.T,            # [16, 8]
        b2[None, :],      # [1, 8]
        w3,               # [1, 8]   (row vector for multiply + lane reduce)
        b3[None, :],      # [1, 1]
    )


def _pick_block_rows(B, block_b):
    """Batch tile (sublane axis): multiple of 8; >= 2 grid steps when possible
    so the 'parallel' batch axis can be sharded across v7x's 2 TensorCores."""
    if B <= 8:
        return B
    bm = min(block_b, _round_up(B, 8))
    half = max(8, _round_up((B + 1) // 2, 8))
    return max(8, min(bm, half))


def mlp_forward(x, params, block_b=8192):
    """x: [B, n_entradas] float32 (row-major, as in the nn.Module).
    Returns [B, 1] float32."""
    x = x.astype(jnp.float32)
    B, n_in = x.shape
    w1t, b1, w2t, b2, w3, b3 = _prep_weights(params)

    bm = _pick_block_rows(B, block_b)
    grid = (pl.cdiv(B, bm),)

    def resident(arr):
        return pl.BlockSpec(arr.shape, lambda i: (0, 0))

    weight_bytes = 4 * sum(int(a.size) for a in (w1t, b1, w2t, b2, w3, b3))
    cost = pl.CostEstimate(
        flops=int(2 * B * (16 * n_in + 16 * 8 + 8)),
        transcendentals=0,
        bytes_accessed=int(B * n_in * 4 + B * 4 + weight_bytes),
    )

    out = pl.pallas_call(
        mlp_kernel,
        out_shape=jax.ShapeDtypeStruct((B, 1), jnp.float32),
        grid=grid,
        in_specs=[
            pl.BlockSpec((bm, n_in), lambda i: (i, 0)),   # x streamed over batch
            resident(w1t), resident(b1),                  # tiny weights stay in VMEM
            resident(w2t), resident(b2),
            resident(w3), resident(b3),
        ],
        out_specs=pl.BlockSpec((bm, 1), lambda i: (i, 0)),
        compiler_params=pltpu.CompilerParams(
            dimension_semantics=("parallel",),
            vmem_limit_bytes=48 * 1024 * 1024,
        ),
        cost_estimate=cost,
    )(x, w1t, b1, w2t, b2, w3, b3)

    return out


def init_params(key, n_entradas):
    """nn.Linear-style init; PyTorch-native layouts (w: [out, in], b: [out])."""
    ks = jax.random.split(key, 6)

    def lin(kw, kb, fan_in, fan_out):
        bound = 1.0 / float(fan_in) ** 0.5
        w = jax.random.uniform(kw, (fan_out, fan_in), jnp.float32, -bound, bound)
        b = jax.random.uniform(kb, (fan_out,), jnp.float32, -bound, bound)
        return w, b

    w1, b1 = lin(ks[0], ks[1], n_entradas, 15)
    w2, b2 = lin(ks[2], ks[3], 15, 8)
    w3, b3 = lin(ks[4], ks[5], 8, 1)
    return {"w1": w1, "b1": b1, "w2": w2, "b2": b2, "w3": w3, "b3": b3}


def mlp_reference(x, p):
    h1 = jnp.maximum(x @ p["w1"].T + p["b1"], 0.0)
    h2 = jnp.maximum(h1 @ p["w2"].T + p["b2"], 0.0)
    h3 = jnp.maximum(h2 @ p["w3"].T + p["b3"], 0.0)
    return h3


if __name__ == "__main__":
    key = jax.random.PRNGKey(0)
    k_params, k_x, k_params2, k_x2 = jax.random.split(key, 4)

    # Primary check: small shapes consistent with the module.
    batch, n_entradas = 8, 16
    params = init_params(k_params, n_entradas)
    x = jax.random.normal(k_x, (batch, n_entradas), jnp.float32)

    out = jax.block_until_ready(mlp_forward(x, params))
    ref = mlp_reference(x, params)
    assert out.shape == (batch, 1), out.shape
    assert jnp.allclose(out, ref, atol=1e-5, rtol=1e-5)

    # Secondary check: non-multiple-of-8 batch exercises the masked trailing
    # block (no padding / slicing anywhere in the wrapper).
    batch2, n_in2 = 50, 5
    params2 = init_params(k_params2, n_in2)
    x2 = jax.random.normal(k_x2, (batch2, n_in2), jnp.float32)

    out2 = jax.block_until_ready(mlp_forward(x2, params2))
    ref2 = mlp_reference(x2, params2)
    assert out2.shape == (batch2, 1), out2.shape
    assert jnp.allclose(out2, ref2, atol=1e-5, rtol=1e-5)

    print("KERNEL_OK")
</pallas_src>

<mosaic_0001>
module attributes {stable_mosaic.version = 11 : i64} {
  func.func @mlp_kernel(%arg0: i32, %arg1: memref<8x16xf32, #tpu.memory_space<vmem>>, %arg2: memref<16x16xf32, #tpu.memory_space<vmem>>, %arg3: memref<1x16xf32, #tpu.memory_space<vmem>>, %arg4: memref<16x8xf32, #tpu.memory_space<vmem>>, %arg5: memref<1x8xf32, #tpu.memory_space<vmem>>, %arg6: memref<1x8xf32, #tpu.memory_space<vmem>>, %arg7: memref<1x1xf32, #tpu.memory_space<vmem>>, %arg8: memref<8x1xf32, #tpu.memory_space<vmem>>) attributes {dimension_semantics = [#tpu.dimension_semantics<parallel>], iteration_bounds = array<i64: 1>, scalar_prefetch = 0 : i64, scratch_operands = 0 : i64, tpu.core_type = #tpu.core_type<tc>, window_params = [{transform_indices = @transform_0, window_bounds = array<i64: 8, 16>}, {pipeline_mode = #tpu.pipeline_mode<synchronous>, transform_indices = @transform_1, window_bounds = array<i64: 16, 16>}, {pipeline_mode = #tpu.pipeline_mode<synchronous>, transform_indices = @transform_2, window_bounds = array<i64: 1, 16>}, {pipeline_mode = #tpu.pipeline_mode<synchronous>, transform_indices = @transform_3, window_bounds = array<i64: 16, 8>}, {pipeline_mode = #tpu.pipeline_mode<synchronous>, transform_indices = @transform_4, window_bounds = array<i64: 1, 8>}, {pipeline_mode = #tpu.pipeline_mode<synchronous>, transform_indices = @transform_5, window_bounds = array<i64: 1, 8>}, {pipeline_mode = #tpu.pipeline_mode<synchronous>, transform_indices = @transform_6, window_bounds = array<i64: 1, 1>}, {transform_indices = @transform_7, window_bounds = array<i64: 8, 1>}]} {
    %c0 = arith.constant 0 : index
    %c0_0 = arith.constant 0 : index
    %0 = vector.load %arg1[%c0, %c0_0] : memref<8x16xf32, #tpu.memory_space<vmem>>, vector<8x16xf32>
    %c0_1 = arith.constant 0 : index
    %c0_2 = arith.constant 0 : index
    %1 = vector.load %arg2[%c0_1, %c0_2] : memref<16x16xf32, #tpu.memory_space<vmem>>, vector<16x16xf32>
    %cst = arith.constant dense<0.000000e+00> : vector<8x16xf32>
    %2 = tpu.matmul %0, %1, %cst {dimension_numbers = #tpu.dot_dimension_numbers<[1], [0], [0], [1], [0, 0, 1, 1], [], []>, precision = #tpu.contract_precision<fp32>} : vector<8x16xf32>, vector<16x16xf32>, vector<8x16xf32> -> vector<8x16xf32>
    %c0_3 = arith.constant 0 : index
    %c0_4 = arith.constant 0 : index
    %3 = vector.load %arg3[%c0_3, %c0_4] : memref<1x16xf32, #tpu.memory_space<vmem>>, vector<1x16xf32>
    %4 = vector.broadcast %3 : vector<1x16xf32> to vector<8x16xf32>
    %5 = arith.addf %2, %4 : vector<8x16xf32>
    %cst_5 = arith.constant 0.000000e+00 : f32
    %6 = vector.broadcast %cst_5 : f32 to vector<8x16xf32>
    %7 = arith.maximumf %5, %6 : vector<8x16xf32>
    %c0_6 = arith.constant 0 : index
    %c0_7 = arith.constant 0 : index
    %8 = vector.load %arg4[%c0_6, %c0_7] : memref<16x8xf32, #tpu.memory_space<vmem>>, vector<16x8xf32>
    %cst_8 = arith.constant dense<0.000000e+00> : vector<8x8xf32>
    %9 = tpu.matmul %7, %8, %cst_8 {dimension_numbers = #tpu.dot_dimension_numbers<[1], [0], [0], [1], [0, 0, 1, 1], [], []>, precision = #tpu.contract_precision<fp32>} : vector<8x16xf32>, vector<16x8xf32>, vector<8x8xf32> -> vector<8x8xf32>
    %c0_9 = arith.constant 0 : index
    %c0_10 = arith.constant 0 : index
    %10 = vector.load %arg5[%c0_9, %c0_10] : memref<1x8xf32, #tpu.memory_space<vmem>>, vector<1x8xf32>
    %11 = vector.broadcast %10 : vector<1x8xf32> to vector<8x8xf32>
    %12 = arith.addf %9, %11 : vector<8x8xf32>
    %cst_11 = arith.constant 0.000000e+00 : f32
    %13 = vector.broadcast %cst_11 : f32 to vector<8x8xf32>
    %14 = arith.maximumf %12, %13 : vector<8x8xf32>
    %c0_12 = arith.constant 0 : index
    %c0_13 = arith.constant 0 : index
    %15 = vector.load %arg6[%c0_12, %c0_13] : memref<1x8xf32, #tpu.memory_space<vmem>>, vector<1x8xf32>
    %16 = vector.broadcast %15 : vector<1x8xf32> to vector<8x8xf32>
    %17 = arith.mulf %14, %16 : vector<8x8xf32>
    %cst_14 = arith.constant dense<0.000000e+00> : vector<8xf32>
    %18 = vector.multi_reduction <add>, %17, %cst_14 [1] : vector<8x8xf32> to vector<8xf32>
    %19 = vector.shape_cast %18 : vector<8xf32> to vector<8x1xf32>
    %c0_15 = arith.constant 0 : index
    %c0_16 = arith.constant 0 : index
    %20 = vector.load %arg7[%c0_15, %c0_16] : memref<1x1xf32, #tpu.memory_space<vmem>>, vector<1x1xf32>
    %21 = vector.broadcast %20 : vector<1x1xf32> to vector<8x1xf32>
    %22 = arith.addf %19, %21 : vector<8x1xf32>
    %cst_17 = arith.constant 0.000000e+00 : f32
    %23 = vector.broadcast %cst_17 : f32 to vector<8x1xf32>
    %24 = arith.maximumf %22, %23 : vector<8x1xf32>
    %c0_18 = arith.constant 0 : index
    %c0_19 = arith.constant 0 : index
    %25 = vector.load %arg8[%c0_18, %c0_19] : memref<8x1xf32, #tpu.memory_space<vmem>>, vector<8x1xf32>
    tpu.vector_store %arg8[%c0_18, %c0_19], %24 {strides = array<i32>} : memref<8x1xf32, #tpu.memory_space<vmem>>, vector<8x1xf32>,
    return
  }
  func.func @transform_0(%arg0: i32) -> (i32, i32) {
    %c0_i32 = arith.constant 0 : i32
    %c0_i32_0 = arith.constant 0 : i32
    return %arg0, %c0_i32 : i32, i32
  }
  func.func @transform_1(%arg0: i32) -> (i32, i32) {
    %c0_i32 = arith.constant 0 : i32
    %c0_i32_0 = arith.constant 0 : i32
    %c0_i32_1 = arith.constant 0 : i32
    return %c0_i32, %c0_i32_0 : i32, i32
  }
  func.func @transform_2(%arg0: i32) -> (i32, i32) {
    %c0_i32 = arith.constant 0 : i32
    %c0_i32_0 = arith.constant 0 : i32
    %c0_i32_1 = arith.constant 0 : i32
    return %c0_i32, %c0_i32_0 : i32, i32
  }
  func.func @transform_3(%arg0: i32) -> (i32, i32) {
    %c0_i32 = arith.constant 0 : i32
    %c0_i32_0 = arith.constant 0 : i32
    %c0_i32_1 = arith.constant 0 : i32
    return %c0_i32, %c0_i32_0 : i32, i32
  }
  func.func @transform_4(%arg0: i32) -> (i32, i32) {
    %c0_i32 = arith.constant 0 : i32
    %c0_i32_0 = arith.constant 0 : i32
    %c0_i32_1 = arith.constant 0 : i32
    return %c0_i32, %c0_i32_0 : i32, i32
  }
  func.func @transform_5(%arg0: i32) -> (i32, i32) {
    %c0_i32 = arith.constant 0 : i32
    %c0_i32_0 = arith.constant 0 : i32
    %c0_i32_1 = arith.constant 0 : i32
    return %c0_i32, %c0_i32_0 : i32, i32
  }
  func.func @transform_6(%arg0: i32) -> (i32, i32) {
    %c0_i32 = arith.constant 0 : i32
    %c0_i32_0 = arith.constant 0 : i32
    %c0_i32_1 = arith.constant 0 : i32
    return %c0_i32, %c0_i32_0 : i32, i32
  }
  func.func @transform_7(%arg0: i32) -> (i32, i32) {
    %c0_i32 = arith.constant 0 : i32
    %c0_i32_0 = arith.constant 0 : i32
    return %arg0, %c0_i32 : i32, i32
  }
}

</mosaic_0001>

<llo_original>
// kernel: tpu_custom_call.1
$region0: #{tpu_custom_call.1}
  #allocation0 [shape = 'u32[]', space=smem, size = 0x4, offset = 0x4, fixed_abs, tag = 'smem constant byte address 0x4 - core index']
  #allocation1 [shape = 'u32[72,128]{1,0:T(1,128)}', space=vmem, size = 0x9000, scoped, tag = 'internal scratch']
  #allocation2 [shape = 'f32[1,1]{1,0:T(1,128)S(1)}', space=vmem, size = 0x200, scoped, tag = 'scoped memory for tpu_custom_call.1']
  %s0 = inlined_call_operand.vmem [shape: f32[8,16], index: 0, kind: input, shape index: {}]
  %s1 = inlined_call_operand.vmem [shape: f32[16,16], index: 1, kind: input, shape index: {}]
  %s2 = inlined_call_operand.vmem [shape: f32[1,16], index: 2, kind: input, shape index: {}]
  %s3 = inlined_call_operand.vmem [shape: f32[16,8], index: 3, kind: input, shape index: {}]
  %s4 = inlined_call_operand.vmem [shape: f32[1,8], index: 4, kind: input, shape index: {}]
  %s5 = inlined_call_operand.vmem [shape: f32[1,8], index: 5, kind: input, shape index: {}]
  %s6 = inlined_call_operand.<no memory space> [shape: f32[1,1], index: 6, kind: input, shape index: {}]
  %s7 = inlined_call_operand.vmem [shape: f32[8,1], index: 7, kind: output, shape index: {}]
  %s8 = sld [smem:[#allocation0]]
  $region38: #{tpu_custom_call.1} parent=0
    _
  %s10 = ssub.s32 1, %s8
  %s11 = scalar_select 0, %s10, %s8
  %v12 = vstv %s6
  %13 = vst [vmem:[#allocation2] sm:$0x1] %v12
  // Predicated region
  $region2: #{tpu_custom_call.1} parent=0 // pred_check
    _
  $region3: #{tpu_custom_call.1} parent=0 // pred_check_branch
    %15 = sbr.rel (0) target = $region5
  $region4: #{tpu_custom_call.1} parent=0 // pred_region
    _
  $region5: #{tpu_custom_call.1} parent=0 // pred_fallthru
    _
  // Predicated region
  $region6: #{tpu_custom_call.1} parent=0 // pred_check
    _
  $region7: #{tpu_custom_call.1} parent=0 // pred_check_branch
    %17 = sbr.rel (0) target = $region9
  $region8: #{tpu_custom_call.1} parent=0 // pred_region
    _
  $region9: #{tpu_custom_call.1} parent=0 // pred_fallthru
    _
  // Predicated region
  $region10: #{tpu_custom_call.1} parent=0 // pred_check
    _
  $region11: #{tpu_custom_call.1} parent=0 // pred_check_branch
    %19 = sbr.rel (0) target = $region13
  $region12: #{tpu_custom_call.1} parent=0 // pred_region
    _
  $region13: #{tpu_custom_call.1} parent=0 // pred_fallthru
    _
  // Predicated region
  $region14: #{tpu_custom_call.1} parent=0 // pred_check
    _
  $region15: #{tpu_custom_call.1} parent=0 // pred_check_branch
    %21 = sbr.rel (0) target = $region17
  $region16: #{tpu_custom_call.1} parent=0 // pred_region
    _
  $region17: #{tpu_custom_call.1} parent=0 // pred_fallthru
    _
  // Predicated region
  $region18: #{tpu_custom_call.1} parent=0 // pred_check
    _
  $region19: #{tpu_custom_call.1} parent=0 // pred_check_branch
    %23 = sbr.rel (0) target = $region21
  $region20: #{tpu_custom_call.1} parent=0 // pred_region
    _
  $region21: #{tpu_custom_call.1} parent=0 // pred_fallthru
    _
  // Predicated region
  $region22: #{tpu_custom_call.1} parent=0 // pred_check
    _
  $region23: #{tpu_custom_call.1} parent=0 // pred_check_branch
    %25 = sbr.rel (0) target = $region25
  $region24: #{tpu_custom_call.1} parent=0 // pred_region
    _
  $region25: #{tpu_custom_call.1} parent=0 // pred_fallthru
    _
  // Predicated region
  $region26: #{tpu_custom_call.1} parent=0 // pred_check
    _
  $region27: #{tpu_custom_call.1} parent=0 // pred_check_branch
    %27 = sbr.rel (0) target = $region29
  $region28: #{tpu_custom_call.1} parent=0 // pred_region
    _
  $region29: #{tpu_custom_call.1} parent=0 // pred_fallthru
    _
  %v28 = vld [vmem:[%s0] sm:$0xff]
  %v29 = vld [vmem:[%s1] sm:$0xff]
  %v30 = vld [vmem:[%s1 + $0x8] sm:$0xff]
  %v31 = vld [vmem:[%s2] sm:$0x1]
  %v33 = vperm.slane %v31, 0
  %vm35 = vcmask 130048
  %v37 = vsel %vm35, %v28, 0
  %39 = vmatpush.msra.mxu0 0.0
  %40 = vmatpush.msra.mxu0 0.0
  %41 = vmatpush.msra.mxu0 0.0
  %42 = vmatpush.msra.mxu0 0.0
  %43 = vmatpush.msra.mxu0 0.0
  %44 = vmatpush.msra.mxu0 0.0
  %45 = vmatpush.msra.mxu0 0.0
  %46 = vmatpush.msra.mxu0 0.0
  %47 = vmatpush.msra.mxu0 0.0
  %48 = vmatpush.msra.mxu0 0.0
  %49 = vmatpush.msra.mxu0 0.0
  %50 = vmatpush.msra.mxu0 0.0
  %51 = vmatpush.msra.mxu0 0.0
  %52 = vmatpush.msra.mxu0 0.0
  %v53 = vand.u32 %v30, 4294901760
  %54 = vmatpush.msra.mxu0 %v53
  %v55 = vand.u32 %v29, 4294901760
  %56 = vmatpush.msra.mxu0 %v55
  %v57 = vand.u32 %v37, 4294901760
  %v58 = vsub.f32 %v37, %v57
  %v59 = vand.u32 %v58, 4294901760
  %v60 = vsub.f32 %v58, %v59
  %v61 = vand.u32 %v60, 4294901760
  %62 = vmatmul.f32.gmra.mxu0 %v61
  %v63 = vpop.f32.mrf.mxu0
  %v64 = vadd.f32 %v33, %v63
  %65 = vdwg.mxu0
  %66 = vmatpush.msra.mxu0 0.0
  %67 = vmatpush.msra.mxu0 0.0
  %68 = vmatpush.msra.mxu0 0.0
  %69 = vmatpush.msra.mxu0 0.0
  %70 = vmatpush.msra.mxu0 0.0
  %71 = vmatpush.msra.mxu0 0.0
  %72 = vmatpush.msra.mxu0 0.0
  %73 = vmatpush.msra.mxu0 0.0
  %74 = vmatpush.msra.mxu0 0.0
  %75 = vmatpush.msra.mxu0 0.0
  %76 = vmatpush.msra.mxu0 0.0
  %77 = vmatpush.msra.mxu0 0.0
  %78 = vmatpush.msra.mxu0 0.0
  %79 = vmatpush.msra.mxu0 0.0
  %v80 = vand.u32 %v30, 4294901760
  %v81 = vsub.f32 %v30, %v80
  %v82 = vand.u32 %v81, 4294901760
  %v83 = vsub.f32 %v81, %v82
  %v84 = vand.u32 %v83, 4294901760
  %85 = vmatpush.msra.mxu0 %v84
  %v86 = vand.u32 %v29, 4294901760
  %v87 = vsub.f32 %v29, %v86
  %v88 = vand.u32 %v87, 4294901760
  %v89 = vsub.f32 %v87, %v88
  %v90 = vand.u32 %v89, 4294901760
  %91 = vmatpush.msra.mxu0 %v90
  %v92 = vand.u32 %v37, 4294901760
  %93 = vmatmul.f32.gmra.mxu0 %v92
  %v94 = vpop.f32.mrf.mxu0
  %v95 = vadd.f32 %v64, %v94
  %96 = vdwg.mxu0
  %97 = vmatpush.msra.mxu0 0.0
  %98 = vmatpush.msra.mxu0 0.0
  %99 = vmatpush.msra.mxu0 0.0
  %100 = vmatpush.msra.mxu0 0.0
  %101 = vmatpush.msra.mxu0 0.0
  %102 = vmatpush.msra.mxu0 0.0
  %103 = vmatpush.msra.mxu0 0.0
  %104 = vmatpush.msra.mxu0 0.0
  %105 = vmatpush.msra.mxu0 0.0
  %106 = vmatpush.msra.mxu0 0.0
  %107 = vmatpush.msra.mxu0 0.0
  %108 = vmatpush.msra.mxu0 0.0
  %109 = vmatpush.msra.mxu0 0.0
  %110 = vmatpush.msra.mxu0 0.0
  %v111 = vand.u32 %v30, 4294901760
  %v112 = vsub.f32 %v30, %v111
  %113 = vmatpush.msra.mxu0 %v112
  %v114 = vand.u32 %v29, 4294901760
  %v115 = vsub.f32 %v29, %v114
  %116 = vmatpush.msra.mxu0 %v115
  %v117 = vand.u32 %v37, 4294901760
  %v118 = vsub.f32 %v37, %v117
  %119 = vmatmul.f32.gmra.mxu0 %v118
  %v120 = vpop.f32.mrf.mxu0
  %v121 = vadd.f32 %v95, %v120
  %122 = vdwg.mxu0
  %123 = vmatpush.msra.mxu0 0.0
  %124 = vmatpush.msra.mxu0 0.0
  %125 = vmatpush.msra.mxu0 0.0
  %126 = vmatpush.msra.mxu0 0.0
  %127 = vmatpush.msra.mxu0 0.0
  %128 = vmatpush.msra.mxu0 0.0
  %129 = vmatpush.msra.mxu0 0.0
  %130 = vmatpush.msra.mxu0 0.0
  %131 = vmatpush.msra.mxu0 0.0
  %132 = vmatpush.msra.mxu0 0.0
  %133 = vmatpush.msra.mxu0 0.0
  %134 = vmatpush.msra.mxu0 0.0
  %135 = vmatpush.msra.mxu0 0.0
  %136 = vmatpush.msra.mxu0 0.0
  %v137 = vand.u32 %v30, 4294901760
  %138 = vmatpush.msra.mxu0 %v137
  %v139 = vand.u32 %v29, 4294901760
  %140 = vmatpush.msra.mxu0 %v139
  %v141 = vand.u32 %v37, 4294901760
  %v142 = vsub.f32 %v37, %v141
  %v143 = vand.u32 %v142, 4294901760
  %144 = vmatmul.f32.gmra.mxu0 %v143
  %v145 = vpop.f32.mrf.mxu0
  %v146 = vadd.f32 %v121, %v145
  %147 = vdwg.mxu0
  %148 = vmatpush.msra.mxu0 0.0
  %149 = vmatpush.msra.mxu0 0.0
  %150 = vmatpush.msra.mxu0 0.0
  %151 = vmatpush.msra.mxu0 0.0
  %152 = vmatpush.msra.mxu0 0.0
  %153 = vmatpush.msra.mxu0 0.0
  %154 = vmatpush.msra.mxu0 0.0
  %155 = vmatpush.msra.mxu0 0.0
  %156 = vmatpush.msra.mxu0 0.0
  %157 = vmatpush.msra.mxu0 0.0
  %158 = vmatpush.msra.mxu0 0.0
  %159 = vmatpush.msra.mxu0 0.0
  %160 = vmatpush.msra.mxu0 0.0
  %161 = vmatpush.msra.mxu0 0.0
  %v162 = vand.u32 %v30, 4294901760
  %v163 = vsub.f32 %v30, %v162
  %v164 = vand.u32 %v163, 4294901760
  %165 = vmatpush.msra.mxu0 %v164
  %v166 = vand.u32 %v29, 4294901760
  %v167 = vsub.f32 %v29, %v166
  %v168 = vand.u32 %v167, 4294901760
  %169 = vmatpush.msra.mxu0 %v168
  %v170 = vand.u32 %v37, 4294901760
  %171 = vmatmul.f32.gmra.mxu0 %v170
  %v172 = vpop.f32.mrf.mxu0
  %v173 = vadd.f32 %v146, %v172
  %174 = vdwg.mxu0
  %175 = vmatpush.msra.mxu0 0.0
  %176 = vmatpush.msra.mxu0 0.0
  %177 = vmatpush.msra.mxu0 0.0
  %178 = vmatpush.msra.mxu0 0.0
  %179 = vmatpush.msra.mxu0 0.0
  %180 = vmatpush.msra.mxu0 0.0
  %181 = vmatpush.msra.mxu0 0.0
  %182 = vmatpush.msra.mxu0 0.0
  %183 = vmatpush.msra.mxu0 0.0
  %184 = vmatpush.msra.mxu0 0.0
  %185 = vmatpush.msra.mxu0 0.0
  %186 = vmatpush.msra.mxu0 0.0
  %187 = vmatpush.msra.mxu0 0.0
  %188 = vmatpush.msra.mxu0 0.0
  %v189 = vand.u32 %v30, 4294901760
  %190 = vmatpush.msra.mxu0 %v189
  %v191 = vand.u32 %v29, 4294901760
  %192 = vmatpush.msra.mxu0 %v191
  %v193 = vand.u32 %v37, 4294901760
  %194 = vmatmul.f32.gmra.mxu0 %v193
  %v195 = vpop.f32.mrf.mxu0
  %v196 = vadd.f32 %v173, %v195
  %197 = vdwg.mxu0
  %v198 = vmax.f32 %v196, 0.0
  %v199 = vld [vmem:[%s3] sm:$0xff]
  %v200 = vld [vmem:[%s3 + $0x8] sm:$0xff]
  %v201 = vld [vmem:[%s4] sm:$0x1]
  %v203 = vperm.slane %v201, 0
  %v206 = vsel %vm35, %v198, 0
  %208 = vmatpush.msra.mxu0 0.0
  %209 = vmatpush.msra.mxu0 0.0
  %210 = vmatpush.msra.mxu0 0.0
  %211 = vmatpush.msra.mxu0 0.0
  %212 = vmatpush.msra.mxu0 0.0
  %213 = vmatpush.msra.mxu0 0.0
  %214 = vmatpush.msra.mxu0 0.0
  %215 = vmatpush.msra.mxu0 0.0
  %216 = vmatpush.msra.mxu0 0.0
  %217 = vmatpush.msra.mxu0 0.0
  %218 = vmatpush.msra.mxu0 0.0
  %219 = vmatpush.msra.mxu0 0.0
  %220 = vmatpush.msra.mxu0 0.0
  %221 = vmatpush.msra.mxu0 0.0
  %v222 = vand.u32 %v200, 4294901760
  %223 = vmatpush.msra.mxu0 %v222
  %v224 = vand.u32 %v199, 4294901760
  %225 = vmatpush.msra.mxu0 %v224
  %v226 = vand.u32 %v206, 4294901760
  %v227 = vsub.f32 %v206, %v226
  %v228 = vand.u32 %v227, 4294901760
  %v229 = vsub.f32 %v227, %v228
  %v230 = vand.u32 %v229, 4294901760
  %231 = vmatmul.f32.gmra.mxu0 %v230
  %v232 = vpop.f32.mrf.mxu0
  %v233 = vadd.f32 %v203, %v232
  %234 = vdwg.mxu0
  %235 = vmatpush.msra.mxu0 0.0
  %236 = vmatpush.msra.mxu0 0.0
  %237 = vmatpush.msra.mxu0 0.0
  %238 = vmatpush.msra.mxu0 0.0
  %239 = vmatpush.msra.mxu0 0.0
  %240 = vmatpush.msra.mxu0 0.0
  %241 = vmatpush.msra.mxu0 0.0
  %242 = vmatpush.msra.mxu0 0.0
  %243 = vmatpush.msra.mxu0 0.0
  %244 = vmatpush.msra.mxu0 0.0
  %245 = vmatpush.msra.mxu0 0.0
  %246 = vmatpush.msra.mxu0 0.0
  %247 = vmatpush.msra.mxu0 0.0
  %248 = vmatpush.msra.mxu0 0.0
  %v249 = vand.u32 %v200, 4294901760
  %v250 = vsub.f32 %v200, %v249
  %v251 = vand.u32 %v250, 4294901760
  %v252 = vsub.f32 %v250, %v251
  %v253 = vand.u32 %v252, 4294901760
  %254 = vmatpush.msra.mxu0 %v253
  %v255 = vand.u32 %v199, 4294901760
  %v256 = vsub.f32 %v199, %v255
  %v257 = vand.u32 %v256, 4294901760
  %v258 = vsub.f32 %v256, %v257
  %v259 = vand.u32 %v258, 4294901760
  %260 = vmatpush.msra.mxu0 %v259
  %v261 = vand.u32 %v206, 4294901760
  %262 = vmatmul.f32.gmra.mxu0 %v261
  %v263 = vpop.f32.mrf.mxu0
  %v264 = vadd.f32 %v233, %v263
  %265 = vdwg.mxu0
  %266 = vmatpush.msra.mxu0 0.0
  %267 = vmatpush.msra.mxu0 0.0
  %268 = vmatpush.msra.mxu0 0.0
  %269 = vmatpush.msra.mxu0 0.0
  %270 = vmatpush.msra.mxu0 0.0
  %271 = vmatpush.msra.mxu0 0.0
  %272 = vmatpush.msra.mxu0 0.0
  %273 = vmatpush.msra.mxu0 0.0
  %274 = vmatpush.msra.mxu0 0.0
  %275 = vmatpush.msra.mxu0 0.0
  %276 = vmatpush.msra.mxu0 0.0
  %277 = vmatpush.msra.mxu0 0.0
  %278 = vmatpush.msra.mxu0 0.0
  %279 = vmatpush.msra.mxu0 0.0
  %v280 = vand.u32 %v200, 4294901760
  %v281 = vsub.f32 %v200, %v280
  %282 = vmatpush.msra.mxu0 %v281
  %v283 = vand.u32 %v199, 4294901760
  %v284 = vsub.f32 %v199, %v283
  %285 = vmatpush.msra.mxu0 %v284
  %v286 = vand.u32 %v206, 4294901760
  %v287 = vsub.f32 %v206, %v286
  %288 = vmatmul.f32.gmra.mxu0 %v287
  %v289 = vpop.f32.mrf.mxu0
  %v290 = vadd.f32 %v264, %v289
  %291 = vdwg.mxu0
  %292 = vmatpush.msra.mxu0 0.0
  %293 = vmatpush.msra.mxu0 0.0
  %294 = vmatpush.msra.mxu0 0.0
  %295 = vmatpush.msra.mxu0 0.0
  %296 = vmatpush.msra.mxu0 0.0
  %297 = vmatpush.msra.mxu0 0.0
  %298 = vmatpush.msra.mxu0 0.0
  %299 = vmatpush.msra.mxu0 0.0
  %300 = vmatpush.msra.mxu0 0.0
  %301 = vmatpush.msra.mxu0 0.0
  %302 = vmatpush.msra.mxu0 0.0
  %303 = vmatpush.msra.mxu0 0.0
  %304 = vmatpush.msra.mxu0 0.0
  %305 = vmatpush.msra.mxu0 0.0
  %v306 = vand.u32 %v200, 4294901760
  %307 = vmatpush.msra.mxu0 %v306
  %v308 = vand.u32 %v199, 4294901760
  %309 = vmatpush.msra.mxu0 %v308
  %v310 = vand.u32 %v206, 4294901760
  %v311 = vsub.f32 %v206, %v310
  %v312 = vand.u32 %v311, 4294901760
  %313 = vmatmul.f32.gmra.mxu0 %v312
  %v314 = vpop.f32.mrf.mxu0
  %v315 = vadd.f32 %v290, %v314
  %316 = vdwg.mxu0
  %317 = vmatpush.msra.mxu0 0.0
  %318 = vmatpush.msra.mxu0 0.0
  %319 = vmatpush.msra.mxu0 0.0
  %320 = vmatpush.msra.mxu0 0.0
  %321 = vmatpush.msra.mxu0 0.0
  %322 = vmatpush.msra.mxu0 0.0
  %323 = vmatpush.msra.mxu0 0.0
  %324 = vmatpush.msra.mxu0 0.0
  %325 = vmatpush.msra.mxu0 0.0
  %326 = vmatpush.msra.mxu0 0.0
  %327 = vmatpush.msra.mxu0 0.0
  %328 = vmatpush.msra.mxu0 0.0
  %329 = vmatpush.msra.mxu0 0.0
  %330 = vmatpush.msra.mxu0 0.0
  %v331 = vand.u32 %v200, 4294901760
  %v332 = vsub.f32 %v200, %v331
  %v333 = vand.u32 %v332, 4294901760
  %334 = vmatpush.msra.mxu0 %v333
  %v335 = vand.u32 %v199, 4294901760
  %v336 = vsub.f32 %v199, %v335
  %v337 = vand.u32 %v336, 4294901760
  %338 = vmatpush.msra.mxu0 %v337
  %v339 = vand.u32 %v206, 4294901760
  %340 = vmatmul.f32.gmra.mxu0 %v339
  %v341 = vpop.f32.mrf.mxu0
  %v342 = vadd.f32 %v315, %v341
  %343 = vdwg.mxu0
  %344 = vmatpush.msra.mxu0 0.0
  %345 = vmatpush.msra.mxu0 0.0
  %346 = vmatpush.msra.mxu0 0.0
  %347 = vmatpush.msra.mxu0 0.0
  %348 = vmatpush.msra.mxu0 0.0
  %349 = vmatpush.msra.mxu0 0.0
  %350 = vmatpush.msra.mxu0 0.0
  %351 = vmatpush.msra.mxu0 0.0
  %352 = vmatpush.msra.mxu0 0.0
  %353 = vmatpush.msra.mxu0 0.0
  %354 = vmatpush.msra.mxu0 0.0
  %355 = vmatpush.msra.mxu0 0.0
  %356 = vmatpush.msra.mxu0 0.0
  %357 = vmatpush.msra.mxu0 0.0
  %v358 = vand.u32 %v200, 4294901760
  %359 = vmatpush.msra.mxu0 %v358
  %v360 = vand.u32 %v199, 4294901760
  %361 = vmatpush.msra.mxu0 %v360
  %v362 = vand.u32 %v206, 4294901760
  %363 = vmatmul.f32.gmra.mxu0 %v362
  %v364 = vpop.f32.mrf.mxu0
  %v365 = vadd.f32 %v342, %v364
  %366 = vdwg.mxu0
  %v367 = vmax.f32 %v365, 0.0
  %v368 = vld [vmem:[%s5] sm:$0x1]
  %v370 = vperm.slane %v368, 0
  %v372 = vmul.f32 %v367, %v370
  %vm373 = vcmask 64512
  %v374 = vsel %vm373, %v372, 0.0
  %375 = vadd.xlane.f32.xlu0 %v374
  %v376 = vpop.xlane.xlu0 %375
  %v377 = vld [vmem:[#allocation2] sm:$0x1]
  %v379 = vperm.slane %v377, 0
  %v381 = vadd.f32 %v376, %v379
  %v382 = vmax.f32 %v381, 0.0
  %vm383 = vcmask 7168
  %384 = vst.msk [vmem:[%s7] sm:$0xff] %vm383, %v382
  // Predicated region
  $region30: #{tpu_custom_call.1} parent=0 // pred_check
    _
  $region31: #{tpu_custom_call.1} parent=0 // pred_check_branch
    %386 = sbr.rel (0) target = $region33
  $region32: #{tpu_custom_call.1} parent=0 // pred_region
    _
  $region33: #{tpu_custom_call.1} parent=0 // pred_fallthru
    _
  // Predicated region
  $region34: #{tpu_custom_call.1} parent=0 // pred_check
    _
  $region35: #{tpu_custom_call.1} parent=0 // pred_check_branch
    %388 = sbr.rel (0) target = $region37
  $region36: #{tpu_custom_call.1} parent=0 // pred_region
    _
  $region37: #{tpu_custom_call.1} parent=0 // pred_fallthru
    _

</llo_original>
